<compile_context>
chip_gen: v6e
topology: v6e:2x2x1
jax: 0.10.0
libtpu: 0.0.40
codegen_flags: <defaults>
</compile_context>

<pallas_src>
import functools

import jax
import jax.numpy as jnp
from jax import lax
from jax.experimental import pallas as pl
from jax.experimental.pallas import tpu as pltpu


def _skipcat_kernel(xa_ref, xb_ref, w_ref, b_ref, o_ref, *, C, W):
    # xa_ref: (1, C, L)  current L-lane chunk of the zero-padded flat image
    # xb_ref: (1, C, L)  next chunk (supplies the bottom halo rows)
    # w_ref : (C, 9C)    bf16, layout [cout, (ky*3+kx)*C + cin]
    # b_ref : (C, 1)     f32
    # o_ref : (1, 2C, L) input dtype; rows [:C]=x, rows [C:]=relu(conv(x)+b)
    L = xa_ref.shape[2]

    # window = current chunk + next chunk; xwin[:, j] == xpad[:, t*L + j]
    xwin = jnp.concatenate([xa_ref[0], xb_ref[0]], axis=-1)        # (C, 2L)

    # pass-through half of the concat: exact copy of x (no bf16 rounding)
    center = xwin[:, W + 1:W + 1 + L]                              # (C, L)
    o_ref[0, :C, :] = center.astype(o_ref.dtype)

    # column-in-row index, to mask the taps that wrap across image rows
    lane = lax.broadcasted_iota(jnp.int32, (C, L), 1)
    wpos = (lane & (W - 1)) if (W & (W - 1)) == 0 else (lane % W)
    not_left = wpos != 0          # keep-mask for dx == -1 taps
    not_right = wpos != (W - 1)   # keep-mask for dx == +1 taps

    # im2col: 9 shifted lane windows stacked along the contraction axis
    taps = []
    for dy in (-1, 0, 1):
        for dx in (-1, 0, 1):
            off = (W + 1) + dy * W + dx                            # static, >= 0
            tap = xwin[:, off:off + L]                             # (C, L)
            if dx == -1:
                tap = jnp.where(not_left, tap, 0.0)
            elif dx == 1:
                tap = jnp.where(not_right, tap, 0.0)
            taps.append(tap)
    x9 = jnp.concatenate(taps, axis=0).astype(jnp.bfloat16)        # (9C, L)

    # single MXU matmul, f32 accumulation; fused bias + ReLU epilogue
    y = jnp.dot(w_ref[...], x9, preferred_element_type=jnp.float32)  # (C, L)
    y = jnp.maximum(y + b_ref[...], 0.0)
    o_ref[0, C:, :] = y.astype(o_ref.dtype)


def _pick_tile_rows(H, W):
    """Row-tile height TH: H % TH == 0, (TH*W) % 128 == 0, TH*W >= 2W+2,
    biggest tile up to ~4K lanes, preferring >1 tile per image."""
    best = None
    for th in range(1, H):
        L = th * W
        if H % th == 0 and L % 128 == 0 and 2 * W + 2 <= L <= 4096:
            best = th
    if best is None and (H * W) % 128 == 0 and H * W >= 2 * W + 2:
        best = H
    return best


def skipcat(x_nchw, w_oihw, bias):
    """SkipCat forward: concat([x, relu(conv3x3(x) + b)], axis=1).  NCHW in/out."""
    N, C, H, W = x_nchw.shape
    TH = _pick_tile_rows(H, W)
    assert TH is not None, "H*W must be a multiple of 128 for this kernel"
    L = TH * W                      # lanes per row tile
    T = (H * W) // L                # row tiles per image

    # Flatten H*W into the lane axis (free view of NCHW) and zero-pad once:
    # W+1 zeros on the left (top halo + corner), fill to (T+1)*L on the right
    # (bottom halo + a full spare chunk so the t+1 halo view is always valid).
    x_flat = x_nchw.reshape(N, C, H * W)
    pad_l = W + 1
    pad_r = (T + 1) * L - H * W - pad_l
    xp = jnp.pad(x_flat, ((0, 0), (0, 0), (pad_l, pad_r)))

    # (Cout, Cin, 3, 3) -> (Cout, ky, kx, Cin) -> (Cout, 9*Cin), bf16 for MXU
    wmat = jnp.transpose(w_oihw, (0, 2, 3, 1)).reshape(C, 9 * C).astype(jnp.bfloat16)
    b2 = bias.reshape(C, 1).astype(jnp.float32)

    kernel = functools.partial(_skipcat_kernel, C=C, W=W)
    out_flat = pl.pallas_call(
        kernel,
        out_shape=jax.ShapeDtypeStruct((N, 2 * C, H * W), x_nchw.dtype),
        grid_spec=pltpu.PrefetchScalarGridSpec(
            num_scalar_prefetch=0,
            grid=(N, T),
            in_specs=[
                pl.BlockSpec((1, C, L), lambda n, t: (n, 0, t)),       # current chunk
                pl.BlockSpec((1, C, L), lambda n, t: (n, 0, t + 1)),   # halo chunk
                pl.BlockSpec((C, 9 * C), lambda n, t: (0, 0)),         # weights (resident)
                pl.BlockSpec((C, 1), lambda n, t: (0, 0)),             # bias (resident)
            ],
            out_specs=pl.BlockSpec((1, 2 * C, L), lambda n, t: (n, 0, t)),
        ),
        compiler_params=pltpu.CompilerParams(
            dimension_semantics=("parallel", "parallel")),
    )(xp, xp, wmat, b2)

    return out_flat.reshape(N, 2 * C, H, W)


def _reference(x_nchw, w_oihw, bias):
    y = lax.conv_general_dilated(
        x_nchw, w_oihw, window_strides=(1, 1), padding="SAME",
        dimension_numbers=("NCHW", "OIHW", "NCHW"))
    y = jnp.maximum(y + bias.reshape(1, -1, 1, 1), 0.0)
    return jnp.concatenate([x_nchw, y], axis=1)


if __name__ == "__main__":
    N, C, H, W = 2, 4, 16, 16
    key = jax.random.PRNGKey(0)
    kx, kw, kb = jax.random.split(key, 3)
    x = jax.random.normal(kx, (N, C, H, W), jnp.float32)
    w = jax.random.normal(kw, (C, C, 3, 3), jnp.float32) * 0.1
    b = jax.random.normal(kb, (C,), jnp.float32) * 0.1

    out = skipcat(x, w, b)
    jax.block_until_ready(out)

    ref = _reference(x, w, b)
    assert out.shape == (N, 2 * C, H, W)
    # pass-through half must be exact; conv half uses bf16 MXU operands.
    assert jnp.allclose(out[:, :C], x, atol=1e-6, rtol=1e-6), "x half mismatch"
    assert jnp.allclose(out[:, C:], ref[:, C:], atol=2e-2, rtol=2e-2), \
        "conv half mismatch vs reference"

    print("KERNEL_OK")
</pallas_src>

<mosaic_0001>
module attributes {stable_mosaic.version = 11 : i64} {
  func.func @_skipcat_kernel(%arg0: i32, %arg1: i32, %arg2: memref<1x4x128xf32, #tpu.memory_space<vmem>>, %arg3: memref<1x4x128xf32, #tpu.memory_space<vmem>>, %arg4: memref<4x36xbf16, #tpu.memory_space<vmem>>, %arg5: memref<4x1xf32, #tpu.memory_space<vmem>>, %arg6: memref<1x8x128xf32, #tpu.memory_space<vmem>>) attributes {dimension_semantics = [#tpu.dimension_semantics<parallel>, #tpu.dimension_semantics<parallel>], iteration_bounds = array<i64: 2, 2>, scalar_prefetch = 0 : i64, scratch_operands = 0 : i64, tpu.core_type = #tpu.core_type<tc>, window_params = [{transform_indices = @transform_0, window_bounds = array<i64: 1, 4, 128>}, {transform_indices = @transform_1, window_bounds = array<i64: 1, 4, 128>}, {pipeline_mode = #tpu.pipeline_mode<synchronous>, transform_indices = @transform_2, window_bounds = array<i64: 4, 36>}, {pipeline_mode = #tpu.pipeline_mode<synchronous>, transform_indices = @transform_3, window_bounds = array<i64: 4, 1>}, {transform_indices = @transform_4, window_bounds = array<i64: 1, 8, 128>}]} {
    %c0 = arith.constant 0 : index
    %c0_0 = arith.constant 0 : index
    %c0_1 = arith.constant 0 : index
    %0 = vector.load %arg2[%c0, %c0_0, %c0_1] : memref<1x4x128xf32, #tpu.memory_space<vmem>>, vector<1x4x128xf32>
    %1 = vector.shape_cast %0 : vector<1x4x128xf32> to vector<4x128xf32>
    %c0_2 = arith.constant 0 : index
    %c0_3 = arith.constant 0 : index
    %c0_4 = arith.constant 0 : index
    %2 = vector.load %arg3[%c0_2, %c0_3, %c0_4] : memref<1x4x128xf32, #tpu.memory_space<vmem>>, vector<1x4x128xf32>
    %3 = vector.shape_cast %2 : vector<1x4x128xf32> to vector<4x128xf32>
    %4 = tpu.concatenate %1, %3 in 1 : vector<4x128xf32>, vector<4x128xf32> -> vector<4x256xf32>
    %5 = vector.extract_strided_slice %4 {offsets = [0, 17], sizes = [4, 128], strides = [1, 1]} : vector<4x256xf32> to vector<4x128xf32>
    %c0_5 = arith.constant 0 : index
    %c0_6 = arith.constant 0 : index
    %c0_7 = arith.constant 0 : index
    %6 = vector.load %arg6[%c0_5, %c0_6, %c0_7] : memref<1x8x128xf32, #tpu.memory_space<vmem>>, vector<1x4x128xf32>
    %7 = vector.shape_cast %6 : vector<1x4x128xf32> to vector<4x128xf32>
    %8 = vector.shape_cast %5 : vector<4x128xf32> to vector<1x4x128xf32>
    tpu.vector_store %arg6[%c0_5, %c0_6, %c0_7], %8 {strides = array<i32>} : memref<1x8x128xf32, #tpu.memory_space<vmem>>, vector<1x4x128xf32>,
    %9 = tpu.iota {dimensions = array<i32: 1>} : vector<4x128xi32>
    %c15_i32 = arith.constant 15 : i32
    %10 = vector.broadcast %c15_i32 : i32 to vector<4x128xi32>
    %11 = arith.andi %9, %10 : vector<4x128xi32>
    %c0_i32 = arith.constant 0 : i32
    %12 = vector.broadcast %c0_i32 : i32 to vector<4x128xi32>
    %13 = arith.cmpi ne, %11, %12 : vector<4x128xi32>
    %c15_i32_8 = arith.constant 15 : i32
    %14 = vector.broadcast %c15_i32_8 : i32 to vector<4x128xi32>
    %15 = arith.cmpi ne, %11, %14 : vector<4x128xi32>
    %16 = vector.extract_strided_slice %4 {offsets = [0, 0], sizes = [4, 128], strides = [1, 1]} : vector<4x256xf32> to vector<4x128xf32>
    %cst = arith.constant 0.000000e+00 : f32
    %17 = vector.broadcast %cst : f32 to vector<4x128xf32>
    %18 = arith.select %13, %16, %17 : vector<4x128xi1>, vector<4x128xf32>
    %19 = vector.extract_strided_slice %4 {offsets = [0, 1], sizes = [4, 128], strides = [1, 1]} : vector<4x256xf32> to vector<4x128xf32>
    %20 = vector.extract_strided_slice %4 {offsets = [0, 2], sizes = [4, 128], strides = [1, 1]} : vector<4x256xf32> to vector<4x128xf32>
    %cst_9 = arith.constant 0.000000e+00 : f32
    %21 = vector.broadcast %cst_9 : f32 to vector<4x128xf32>
    %22 = arith.select %15, %20, %21 : vector<4x128xi1>, vector<4x128xf32>
    %23 = vector.extract_strided_slice %4 {offsets = [0, 16], sizes = [4, 128], strides = [1, 1]} : vector<4x256xf32> to vector<4x128xf32>
    %cst_10 = arith.constant 0.000000e+00 : f32
    %24 = vector.broadcast %cst_10 : f32 to vector<4x128xf32>
    %25 = arith.select %13, %23, %24 : vector<4x128xi1>, vector<4x128xf32>
    %26 = vector.extract_strided_slice %4 {offsets = [0, 17], sizes = [4, 128], strides = [1, 1]} : vector<4x256xf32> to vector<4x128xf32>
    %27 = vector.extract_strided_slice %4 {offsets = [0, 18], sizes = [4, 128], strides = [1, 1]} : vector<4x256xf32> to vector<4x128xf32>
    %cst_11 = arith.constant 0.000000e+00 : f32
    %28 = vector.broadcast %cst_11 : f32 to vector<4x128xf32>
    %29 = arith.select %15, %27, %28 : vector<4x128xi1>, vector<4x128xf32>
    %30 = vector.extract_strided_slice %4 {offsets = [0, 32], sizes = [4, 128], strides = [1, 1]} : vector<4x256xf32> to vector<4x128xf32>
    %cst_12 = arith.constant 0.000000e+00 : f32
    %31 = vector.broadcast %cst_12 : f32 to vector<4x128xf32>
    %32 = arith.select %13, %30, %31 : vector<4x128xi1>, vector<4x128xf32>
    %33 = vector.extract_strided_slice %4 {offsets = [0, 33], sizes = [4, 128], strides = [1, 1]} : vector<4x256xf32> to vector<4x128xf32>
    %34 = vector.extract_strided_slice %4 {offsets = [0, 34], sizes = [4, 128], strides = [1, 1]} : vector<4x256xf32> to vector<4x128xf32>
    %cst_13 = arith.constant 0.000000e+00 : f32
    %35 = vector.broadcast %cst_13 : f32 to vector<4x128xf32>
    %36 = arith.select %15, %34, %35 : vector<4x128xi1>, vector<4x128xf32>
    %37 = tpu.concatenate %18, %19, %22, %25, %26, %29, %32, %33, %36 in 0 : vector<4x128xf32>, vector<4x128xf32>, vector<4x128xf32>, vector<4x128xf32>, vector<4x128xf32>, vector<4x128xf32>, vector<4x128xf32>, vector<4x128xf32>, vector<4x128xf32> -> vector<36x128xf32>
    %38 = arith.truncf %37 : vector<36x128xf32> to vector<36x128xbf16>
    %c0_14 = arith.constant 0 : index
    %c0_15 = arith.constant 0 : index
    %39 = vector.load %arg4[%c0_14, %c0_15] : memref<4x36xbf16, #tpu.memory_space<vmem>>, vector<4x36xbf16>
    %cst_16 = arith.constant dense<0.000000e+00> : vector<4x128xf32>
    %40 = tpu.matmul %39, %38, %cst_16 {dimension_numbers = #tpu.dot_dimension_numbers<[1], [0], [0], [1], [0, 0, 1, 1], [], []>} : vector<4x36xbf16>, vector<36x128xbf16>, vector<4x128xf32> -> vector<4x128xf32>
    %c0_17 = arith.constant 0 : index
    %c0_18 = arith.constant 0 : index
    %41 = vector.load %arg5[%c0_17, %c0_18] : memref<4x1xf32, #tpu.memory_space<vmem>>, vector<4x1xf32>
    %42 = vector.broadcast %41 : vector<4x1xf32> to vector<4x128xf32>
    %43 = arith.addf %40, %42 : vector<4x128xf32>
    %cst_19 = arith.constant 0.000000e+00 : f32
    %44 = vector.broadcast %cst_19 : f32 to vector<4x128xf32>
    %45 = arith.maximumf %43, %44 : vector<4x128xf32>
    %c0_20 = arith.constant 0 : index
    %c4 = arith.constant 4 : index
    %c0_21 = arith.constant 0 : index
    %46 = vector.load %arg6[%c0_20, %c4, %c0_21] : memref<1x8x128xf32, #tpu.memory_space<vmem>>, vector<1x4x128xf32>
    %47 = vector.shape_cast %46 : vector<1x4x128xf32> to vector<4x128xf32>
    %48 = vector.shape_cast %45 : vector<4x128xf32> to vector<1x4x128xf32>
    tpu.vector_store %arg6[%c0_20, %c4, %c0_21], %48 {strides = array<i32>} : memref<1x8x128xf32, #tpu.memory_space<vmem>>, vector<1x4x128xf32>,
    return
  }
  func.func @transform_0(%arg0: i32, %arg1: i32) -> (i32, i32, i32) {
    %c0_i32 = arith.constant 0 : i32
    %c0_i32_0 = arith.constant 0 : i32
    return %arg0, %c0_i32, %arg1 : i32, i32, i32
  }
  func.func @transform_1(%arg0: i32, %arg1: i32) -> (i32, i32, i32) {
    %c1_i32 = arith.constant 1 : i32
    %0 = arith.addi %arg1, %c1_i32 : i32
    %c0_i32 = arith.constant 0 : i32
    %c0_i32_0 = arith.constant 0 : i32
    return %arg0, %c0_i32, %0 : i32, i32, i32
  }
  func.func @transform_2(%arg0: i32, %arg1: i32) -> (i32, i32) {
    %c0_i32 = arith.constant 0 : i32
    %c0_i32_0 = arith.constant 0 : i32
    %c0_i32_1 = arith.constant 0 : i32
    return %c0_i32, %c0_i32_0 : i32, i32
  }
  func.func @transform_3(%arg0: i32, %arg1: i32) -> (i32, i32) {
    %c0_i32 = arith.constant 0 : i32
    %c0_i32_0 = arith.constant 0 : i32
    %c0_i32_1 = arith.constant 0 : i32
    return %c0_i32, %c0_i32_0 : i32, i32
  }
  func.func @transform_4(%arg0: i32, %arg1: i32) -> (i32, i32, i32) {
    %c0_i32 = arith.constant 0 : i32
    %c0_i32_0 = arith.constant 0 : i32
    return %arg0, %c0_i32, %arg1 : i32, i32, i32
  }
}

</mosaic_0001>

<llo_original>
// kernel: tpu_custom_call.1
$region0: #{tpu_custom_call.1}
  #allocation0 [shape = 'u32[]', space=smem, size = 0x4, offset = 0x4, fixed_abs, tag = 'smem constant byte address 0x4 - core index']
  #allocation1 [shape = 'u32[144,128]{1,0:T(1,128)}', space=vmem, size = 0x12000, scoped, tag = 'internal scratch']
  %s0 = inlined_call_operand.hbm [shape: f32[2,4,384], index: 0, kind: input, shape index: {}]
  %s1 = inlined_call_operand.hbm [shape: f32[2,4,384], index: 1, kind: input, shape index: {}]
  %s2 = inlined_call_operand.vmem [shape: bf16[4,36], index: 2, kind: input, shape index: {}]
  %s3 = inlined_call_operand.vmem [shape: f32[4,1], index: 3, kind: input, shape index: {}]
  %s4 = inlined_call_operand.hbm [shape: f32[2,8,256], index: 4, kind: output, shape index: {}]
  %s5 = sld [smem:[#allocation0]]
  $region57: #{tpu_custom_call.1} parent=0
    _
  %s7 = ssub.s32 1, %s5
  %s8 = scalar_select 0, %s7, %s5
  $region1: #{tpu_custom_call.1} parent=0
    #allocation2 [shape = 'u8[4096]{0}', space=vmem, size = 0x1000, scoped, tag = 'input window, operand 0']
    #allocation3 [shape = 's32[2]{0}', space=sflag, size = 0x8, scoped, tag = 'scoped memory for tpu_custom_call.1']
    #allocation4 [shape = 's32[2]{0}', space=sflag, size = 0x8, scoped, tag = 'scoped memory for tpu_custom_call.1']
    #allocation5 [shape = 'u8[4096]{0}', space=vmem, size = 0x1000, scoped, tag = 'input window, operand 1']
    #allocation6 [shape = 's32[2]{0}', space=sflag, size = 0x8, scoped, tag = 'scoped memory for tpu_custom_call.1']
    #allocation7 [shape = 'u8[8192]{0}', space=vmem, size = 0x2000, scoped, tag = 'output window, operand 0']
    %9 = vsyncpa [#allocation3], 0
    %s10 = scalar_lea.sflag [#allocation3], 1
    %11 = vsyncpa %s10, 0
    %12 = vsyncpa [#allocation6], 0
    %s13 = scalar_lea.sflag [#allocation6], 1
    %14 = vsyncpa %s13, 0
    %15 = vsyncpa [#allocation4], 0
    %s16 = scalar_lea.sflag [#allocation4], 1
    %17 = vsyncpa %s16, 0
    loop: start=0, step=1, limit=6
    $region2: #{tpu_custom_call.1} parent=1 // loop_pre_header
      _
    $region3: #{tpu_custom_call.1} parent=1 // loop_header
      %s19 = sphi 0, %s23
      %p20 = scmp.ge.s32.totalorder %s19, 6
      %s26 = sphi 0, %s38
      %s27 = sphi 0, %s34
      %s28 = sphi 0, %s26
      %s29 = sphi 0, %s27
      %s30 = sphi 0, %s28
      %s31 = sphi 0, %s29
      %s43 = sphi 0, %s45
      %s46 = sphi 0, %s43
      %s47 = sphi 0, %s46
      %s63 = sphi 0, %s47
      %s73 = sphi 0, %s75
      %s76 = sphi 0, %s73
      %s77 = sphi 0, %s76
      %s93 = sphi 0, %s77
      %s97 = sphi 0, %s97
      %s99 = sphi 0, %s97
      %s100 = sphi 0, %s99
      %s114 = sphi 0, %s100
      %s118 = sphi 0, %s118
      %s120 = sphi 0, %s118
      %s121 = sphi 0, %s120
      %s135 = sphi 0, %s121
      %s143 = sphi 0, %s145
      %s146 = sphi 0, %s143
      %s147 = sphi 0, %s146
      %s163 = sphi 0, %s147
    $region4: #{tpu_custom_call.1} parent=1 // loop_header_branch
      %22 = sbr.rel (%p20) target = $region8
    $region5: #{tpu_custom_call.1} parent=1 // loop_body
      %s24 = ssub.s32 %s19, 1
      %s25 = ssub.s32 %s19, 2
      %s32 = sadd.s32 1, %s27
      %p33 = scmp.ge.s32.totalorder %s32, 2
      %s34 = scalar_select %p33, 0, %s32
      %s35 = sadd.s32 1, %s26
      %s36 = scalar_select %p33, %s35, %s26
      %p37 = scmp.ge.s32.totalorder %s36, 2
      %s38 = scalar_select %p37, 0, %s36
      %s39 = ssub.s32 %s26, %s38
      %s40 = ssub.s32 %s27, %s34
      %s41 = sor.u32 %s39, %s40
      %p42 = scmp.eq.s32.totalorder %s41, 0
      %s44 = sadd.s32 %s43, 1
      %s45 = scalar_select %p42, %s43, %s44
      %p48 = pneg %p42
      %p49 = scmp.eq.s32.totalorder %s19, 3
      %p50 = por %p48, %p49
      %p51 = scmp.ne.s32.totalorder %s43, %s46
      %p52 = scmp.eq.s32.totalorder %s19, 0
      %p53 = por %p51, %p52
      %p54 = scmp.ne.s32.totalorder %s43, %s46
      %p55 = scmp.eq.s32.totalorder %s24, 3
      %p56 = por %p54, %p55
      %p57 = scmp.ne.s32.totalorder %s46, %s47
      %p58 = scmp.eq.s32.totalorder %s24, 0
      %p59 = por %p57, %p58
      %p60 = scmp.ne.s32.totalorder %s46, %s47
      %p61 = scmp.eq.s32.totalorder %s25, 3
      %p62 = por %p60, %p61
      %p64 = scmp.ne.s32.totalorder %s47, %s63
      %p65 = scmp.eq.s32.totalorder %s25, 0
      %p66 = por %p64, %p65
      %s67 = sadd.s32 %s27, 1
      %s68 = sadd.s32 %s34, 1
      %s69 = ssub.s32 %s26, %s38
      %s70 = ssub.s32 %s67, %s68
      %s71 = sor.u32 %s69, %s70
      %p72 = scmp.eq.s32.totalorder %s71, 0
      %s74 = sadd.s32 %s73, 1
      %s75 = scalar_select %p72, %s73, %s74
      %p78 = pneg %p72
      %p79 = scmp.eq.s32.totalorder %s19, 3
      %p80 = por %p78, %p79
      %p81 = scmp.ne.s32.totalorder %s73, %s76
      %p82 = scmp.eq.s32.totalorder %s19, 0
      %p83 = por %p81, %p82
      %p84 = scmp.ne.s32.totalorder %s73, %s76
      %p85 = scmp.eq.s32.totalorder %s24, 3
      %p86 = por %p84, %p85
      %p87 = scmp.ne.s32.totalorder %s76, %s77
      %p88 = scmp.eq.s32.totalorder %s24, 0
      %p89 = por %p87, %p88
      %p90 = scmp.ne.s32.totalorder %s76, %s77
      %p91 = scmp.eq.s32.totalorder %s25, 3
      %p92 = por %p90, %p91
      %p94 = scmp.ne.s32.totalorder %s77, %s93
      %p95 = scmp.eq.s32.totalorder %s25, 0
      %p96 = por %p94, %p95
      %s98 = sadd.s32 %s97, 1
      %p101 = scmp.eq.s32.totalorder %s19, 3
      %p102 = scmp.ne.s32.totalorder %s97, %s99
      %p103 = scmp.eq.s32.totalorder %s19, 0
      %p104 = por %p102, %p103
      %p105 = scmp.ne.s32.totalorder %s97, %s99
      %p106 = scmp.eq.s32.totalorder %s24, 3
      %p107 = por %p105, %p106
      %p108 = scmp.ne.s32.totalorder %s99, %s100
      %p109 = scmp.eq.s32.totalorder %s24, 0
      %p110 = por %p108, %p109
      %p111 = scmp.ne.s32.totalorder %s99, %s100
      %p112 = scmp.eq.s32.totalorder %s25, 3
      %p113 = por %p111, %p112
      %p115 = scmp.ne.s32.totalorder %s100, %s114
      %p116 = scmp.eq.s32.totalorder %s25, 0
      %p117 = por %p115, %p116
      %s119 = sadd.s32 %s118, 1
      %p122 = scmp.eq.s32.totalorder %s19, 3
      %p123 = scmp.ne.s32.totalorder %s118, %s120
      %p124 = scmp.eq.s32.totalorder %s19, 0
      %p125 = por %p123, %p124
      %p126 = scmp.ne.s32.totalorder %s118, %s120
      %p127 = scmp.eq.s32.totalorder %s24, 3
      %p128 = por %p126, %p127
      %p129 = scmp.ne.s32.totalorder %s120, %s121
      %p130 = scmp.eq.s32.totalorder %s24, 0
      %p131 = por %p129, %p130
      %p132 = scmp.ne.s32.totalorder %s120, %s121
      %p133 = scmp.eq.s32.totalorder %s25, 3
      %p134 = por %p132, %p133
      %p136 = scmp.ne.s32.totalorder %s121, %s135
      %p137 = scmp.eq.s32.totalorder %s25, 0
      %p138 = por %p136, %p137
      %s139 = ssub.s32 %s26, %s38
      %s140 = ssub.s32 %s27, %s34
      %s141 = sor.u32 %s139, %s140
      %p142 = scmp.eq.s32.totalorder %s141, 0
      %s144 = sadd.s32 %s143, 1
      %s145 = scalar_select %p142, %s143, %s144
      %p148 = pneg %p142
      %p149 = scmp.eq.s32.totalorder %s19, 3
      %p150 = por %p148, %p149
      %p151 = scmp.ne.s32.totalorder %s143, %s146
      %p152 = scmp.eq.s32.totalorder %s19, 0
      %p153 = por %p151, %p152
      %p154 = scmp.ne.s32.totalorder %s143, %s146
      %p155 = scmp.eq.s32.totalorder %s24, 3
      %p156 = por %p154, %p155
      %p157 = scmp.ne.s32.totalorder %s146, %s147
      %p158 = scmp.eq.s32.totalorder %s24, 0
      %p159 = por %p157, %p158
      %p160 = scmp.ne.s32.totalorder %s146, %s147
      %p161 = scmp.eq.s32.totalorder %s25, 3
      %p162 = por %p160, %p161
      %p164 = scmp.ne.s32.totalorder %s147, %s163
      %p165 = scmp.eq.s32.totalorder %s25, 0
      %p166 = por %p164, %p165
      %p167 = scmp.le.s32.totalorder 1, %s19
      %p168 = scmp.lt.s32.totalorder %s19, 5
      %p169 = pnand %p167, %p168
      %p170 = pneg %p169
      // Predicated region
      $region9: #{tpu_custom_call.1} parent=5 // pred_check
        _
      $region10: #{tpu_custom_call.1} parent=5 // pred_check_branch
        %172 = sbr.rel (%p169) target = $region12
      $region11: #{tpu_custom_call.1} parent=5 // pred_region
        %s173 = ssub.s32 %s19, 1
        // Predicated region
        $region13: #{tpu_custom_call.1} parent=11 // pred_check
          %p174 = pneg %p110
        $region14: #{tpu_custom_call.1} parent=11 // pred_check_branch
          %176 = sbr.rel (%p174) target = $region16
        $region15: #{tpu_custom_call.1} parent=11 // pred_region
          _
        $region16: #{tpu_custom_call.1} parent=11 // pred_fallthru
          _
        // Predicated region
        $region17: #{tpu_custom_call.1} parent=11 // pred_check
          %p177 = pneg %p131
        $region18: #{tpu_custom_call.1} parent=11 // pred_check_branch
          %179 = sbr.rel (%p177) target = $region20
        $region19: #{tpu_custom_call.1} parent=11 // pred_region
          _
        $region20: #{tpu_custom_call.1} parent=11 // pred_fallthru
          _
      $region12: #{tpu_custom_call.1} parent=5 // pred_fallthru
        _
      %p180 = scmp.lt.s32.totalorder %s19, 4
      // Predicated region
      $region21: #{tpu_custom_call.1} parent=5 // pred_check
        %p181 = pneg %p180
      $region22: #{tpu_custom_call.1} parent=5 // pred_check_branch
        %183 = sbr.rel (%p181) target = $region24
      $region23: #{tpu_custom_call.1} parent=5 // pred_region
        // Predicated region
        $region25: #{tpu_custom_call.1} parent=23 // pred_check
          %p184 = pneg %p53
        $region26: #{tpu_custom_call.1} parent=23 // pred_check_branch
          %186 = sbr.rel (%p184) target = $region28
        $region27: #{tpu_custom_call.1} parent=23 // pred_region
          %s187 = sand.u32 %s43, 1
          %s188 = scalar_lea.sflag [#allocation3], %s187
          %s189 = sand.u32 %s43, 1
          %s190 = smul.addr %s189, 4
          %s191 = scalar_lea.vmem [#allocation2], %s190
          %s193 = ssub.s32 64, 64
          %194 = vsyncadd %s188, %s193
          %s195 = smul.addr %s26, 3
          %s196 = sadd.s32 %s27, %s195
          %s197 = smul.addr %s196, 64
          %s198 = scalar_lea.hbm %s0, %s197
          %s200 = sshll.u32 %s191, 4
          %s201 = int_to_ptr.vmem [resolvable:$true] %s200
          %203 = dma.hbm_to_vmem [thread:$0]  %s198, 64, %s201, %s188
        $region28: #{tpu_custom_call.1} parent=23 // pred_fallthru
          _
        // Predicated region
        $region29: #{tpu_custom_call.1} parent=23 // pred_check
          %p204 = pneg %p83
        $region30: #{tpu_custom_call.1} parent=23 // pred_check_branch
          %206 = sbr.rel (%p204) target = $region32
        $region31: #{tpu_custom_call.1} parent=23 // pred_region
          %s207 = sand.u32 %s73, 1
          %s208 = scalar_lea.sflag [#allocation6], %s207
          %s209 = sand.u32 %s73, 1
          %s210 = smul.addr %s209, 4
          %s211 = scalar_lea.vmem [#allocation5], %s210
          %s212 = sadd.s32 %s27, 1
          %s214 = ssub.s32 64, 64
          %215 = vsyncadd %s208, %s214
          %s216 = smul.addr %s26, 3
          %s217 = sadd.s32 %s212, %s216
          %s218 = smul.addr %s217, 64
          %s219 = scalar_lea.hbm %s1, %s218
          %s221 = sshll.u32 %s211, 4
          %s222 = int_to_ptr.vmem [resolvable:$true] %s221
          %224 = dma.hbm_to_vmem [thread:$0]  %s219, 64, %s222, %s208
        $region32: #{tpu_custom_call.1} parent=23 // pred_fallthru
          _
      $region24: #{tpu_custom_call.1} parent=5 // pred_fallthru
        _
      %p225 = scmp.le.s32.totalorder 1, %s19
      %p226 = scmp.lt.s32.totalorder %s19, 5
      %p227 = pnand %p225, %p226
      %p228 = pneg %p227
      // Predicated region
      $region33: #{tpu_custom_call.1} parent=5 // pred_check
        _
      $region34: #{tpu_custom_call.1} parent=5 // pred_check_branch
        %230 = sbr.rel (%p227) target = $region36
      $region35: #{tpu_custom_call.1} parent=5 // pred_region
        %s231 = ssub.s32 %s19, 1
        %s232 = sand.u32 %s46, 1
        %s233 = scalar_lea.sflag [#allocation3], %s232
        %s234 = sand.u32 %s46, 1
        %s235 = smul.addr %s234, 4
        %s236 = scalar_lea.vmem [#allocation2], %s235
        // Predicated region
        $region37: #{tpu_custom_call.1} parent=35 // pred_check
          %p237 = pneg %p59
        $region38: #{tpu_custom_call.1} parent=35 // pred_check_branch
          %239 = sbr.rel (%p237) target = $region40
        $region39: #{tpu_custom_call.1} parent=35 // pred_region
          %240 = dma.done %s233, 64
        $region40: #{tpu_custom_call.1} parent=35 // pred_fallthru
          _
        %s241 = sand.u32 %s76, 1
        %s242 = scalar_lea.sflag [#allocation6], %s241
        %s243 = sand.u32 %s76, 1
        %s244 = smul.addr %s243, 4
        %s245 = scalar_lea.vmem [#allocation5], %s244
        // Predicated region
        $region41: #{tpu_custom_call.1} parent=35 // pred_check
          %p246 = pneg %p89
        $region42: #{tpu_custom_call.1} parent=35 // pred_check_branch
          %248 = sbr.rel (%p246) target = $region44
        $region43: #{tpu_custom_call.1} parent=35 // pred_region
          %249 = dma.done %s242, 64
        $region44: #{tpu_custom_call.1} parent=35 // pred_fallthru
          _
        %s250 = sand.u32 %s46, 1
        %s251 = scalar_lea.sflag [#allocation3], %s250
        %s252 = sand.u32 %s46, 1
        %s253 = smul.addr %s252, 4
        %s254 = scalar_lea.vmem [#allocation2], %s253
        %p255 = pneg %p59
        %p256 = pneg %p56
        %s257 = sand.u32 %s76, 1
        %s258 = scalar_lea.sflag [#allocation6], %s257
        %s259 = sand.u32 %s76, 1
        %s260 = smul.addr %s259, 4
        %s261 = scalar_lea.vmem [#allocation5], %s260
        %p262 = pneg %p89
        %p263 = pneg %p86
        %p264 = pneg %p110
        %p265 = pneg %p107
        %p266 = pneg %p131
        %p267 = pneg %p128
        %p268 = pneg %p159
        %p269 = pneg %p156
        %s270 = sand.u32 %s146, 1
        %s271 = scalar_lea.sflag [#allocation4], %s270
        %s272 = sand.u32 %s146, 1
        %s273 = smul.addr %s272, 8
        %s274 = scalar_lea.vmem [#allocation7], %s273
        %s275 = sadd.s32 %s29, 1
        %v277 = vld [vmem:[%s236] sm:$0xf]
        %v278 = vld [vmem:[%s245] sm:$0xf]
        %281 = vrot.lane.b32.xlu0 %v277, 111
        %v282 = vpop.permute.xlu0 %281
        %283 = vrot.lane.b32.xlu0 %v278, 111
        %v284 = vpop.permute.xlu0 %283
        %vm285 = vcmask 908288
        %v286 = vsel %vm285, %v282, %v284
        %288 = vst [vmem:[%s274] sm:$0xf] %v286
        %v289 = vlaneseq
        %v290 = vand.u32 %v289, 127
        %v291 = vand.u32 %v290, 15
        %vm292 = vcmp.ne.s32.totalorder %v291, 0
        %vm293 = vcmp.ne.s32.totalorder %v291, 15
        %v294 = vsel %vm292, %v277, 0.0
        %295 = vrot.lane.b32.xlu0 %v277, 126
        %v296 = vpop.permute.xlu0 %295
        %297 = vrot.lane.b32.xlu0 %v278, 126
        %v298 = vpop.permute.xlu0 %297
        %vm299 = vcmask 1031168
        %v300 = vsel %vm299, %v296, %v298
        %v302 = vsel %vm293, %v300, 0.0
        %303 = vrot.lane.b32.xlu0 %v277, 112
        %v304 = vpop.permute.xlu0 %303
        %305 = vrot.lane.b32.xlu0 %v278, 112
        %v306 = vpop.permute.xlu0 %305
        %vm307 = vcmask 916480
        %v308 = vsel %vm307, %v304, %v306
        %v310 = vsel %vm292, %v308, 0.0
        %311 = vrot.lane.b32.xlu0 %v277, 110
        %v312 = vpop.permute.xlu0 %311
        %313 = vrot.lane.b32.xlu0 %v278, 110
        %v314 = vpop.permute.xlu0 %313
        %vm315 = vcmask 900096
        %v316 = vsel %vm315, %v312, %v314
        %v318 = vsel %vm293, %v316, 0.0
        %319 = vrot.lane.b32.xlu0 %v277, 96
        %v320 = vpop.permute.xlu0 %319
        %321 = vrot.lane.b32.xlu0 %v278, 96
        %v322 = vpop.permute.xlu0 %321
        %vm323 = vcmask 785408
        %v324 = vsel %vm323, %v320, %v322
        %v326 = vsel %vm292, %v324, 0.0
        %327 = vrot.lane.b32.xlu0 %v277, 94
        %v328 = vpop.permute.xlu0 %327
        %329 = vrot.lane.b32.xlu0 %v278, 94
        %v330 = vpop.permute.xlu0 %329
        %vm331 = vcmask 769024
        %v332 = vsel %vm331, %v328, %v330
        %v334 = vsel %vm293, %v332, 0.0
        %v335 = vrot.slane %v277, 4
        %v336 = vrot.slane %v278, 4
        %337 = vrot.lane.b32.xlu0 %v335, 127
        %v338 = vpop.permute.xlu0 %337
        %339 = vrot.lane.b32.xlu0 %v336, 127
        %v340 = vpop.permute.xlu0 %339
        %vm341 = vcmask 1039360
        %v342 = vsel %vm341, %v338, %v340
        %v345 = vrot.slane %v310, 4
        %v348 = vrot.slane %v318, 4
        %350 = vrot.lane.b32.xlu0 %v335, 95
        %v351 = vpop.permute.xlu0 %350
        %352 = vrot.lane.b32.xlu0 %v336, 95
        %v353 = vpop.permute.xlu0 %352
        %vm354 = vcmask 777216
        %v355 = vsel %vm354, %v351, %v353
        %vm357 = vcmask 1043456
        %v358 = vsel %vm357, %v294, %v342
        %v359 = vsel %vm357, %v302, %v345
        %v360 = vsel %vm357, %v286, %v348
        %v361 = vsel %vm357, %v326, %v355
        %v362 = vpack.c.bf16 %v359, %v358
        %v363 = vpack.c.bf16 %v361, %v360
        %v364 = vpack.c.bf16 %v334, %v334
        %v365 = vld [vmem:[%s2] sm:$0x3]
        %v366 = vld [vmem:[%s3] sm:$0xf]
        %368 = vset.pattern.permute.xlu0 0
        %369 = vperm.xlu0 %368, %v366
        %v370 = vpop.permute.xlu0 %369
        %vm372 = vcmask 293888
        %v374 = vsel %vm372, %v365, 0
        %vm376 = vcmask 1041408
        %v378 = vsel %vm376, %v364, 0
        %380 = vmatprep.subr.bf16.mxu0 0
        %381 = vmatpush1.bf16.msra.mxu0 0
        %382 = vmatprep.subr.bf16.mxu0 0
        %383 = vmatpush1.bf16.msra.mxu0 0
        %384 = vmatprep.subr.bf16.mxu0 0
        %385 = vmatpush1.bf16.msra.mxu0 0
        %386 = vmatprep.subr.bf16.mxu0 0
        %387 = vmatpush1.bf16.msra.mxu0 0
        %388 = vmatprep.subr.bf16.mxu0 0
        %389 = vmatpush1.bf16.msra.mxu0 0
        %390 = vmatprep.subr.bf16.mxu0 0
        %391 = vmatpush1.bf16.msra.mxu0 %v378
        %392 = vmatprep.subr.bf16.mxu0 0
        %393 = vmatpush1.bf16.msra.mxu0 %v363
        %394 = vmatprep.subr.bf16.mxu0 0
        %395 = vmatpush1.bf16.msra.mxu0 %v362
        %396 = vmatprep.subr.bf16.mxu0 0
        %397 = vmatpush2.bf16.msra.mxu0 0
        %398 = vmatprep.subr.bf16.mxu0 0
        %399 = vmatpush2.bf16.msra.mxu0 0
        %400 = vmatprep.subr.bf16.mxu0 0
        %401 = vmatpush2.bf16.msra.mxu0 0
        %402 = vmatprep.subr.bf16.mxu0 0
        %403 = vmatpush2.bf16.msra.mxu0 0
        %404 = vmatprep.subr.bf16.mxu0 0
        %405 = vmatpush2.bf16.msra.mxu0 0
        %406 = vmatprep.subr.bf16.mxu0 0
        %407 = vmatpush2.bf16.msra.mxu0 0
        %408 = vmatprep.subr.bf16.mxu0 0
        %409 = vmatpush2.bf16.msra.mxu0 0
        %410 = vmatprep.subr.bf16.mxu0 0
        %411 = vmatpush2.bf16.msra.mxu0 0
        %412 = vmatprep.mubr.bf16.mxu0 0
        %413 = vmatmul.mubr.bf16.gmra.mxu0 %v374
        %v414 = vpop.f32.mrf.mxu0
        %v415 = vadd.f32 %v370, %v414
        %v416 = vpop.f32.mrf.mxu0
        %v417 = vpop.f32.mrf.mxu0
        %v418 = vpop.f32.mrf.mxu0
        %419 = vdwg.mxu0
        %v420 = vmax.f32 %v415, 0.0
        %421 = vst [vmem:[%s274 + $0x4] sm:$0xf] %v420
        %s422 = sand.u32 %s146, 1
        %s423 = scalar_lea.sflag [#allocation4], %s422
        %s424 = sand.u32 %s146, 1
        %s425 = smul.addr %s424, 8
        %s426 = scalar_lea.vmem [#allocation7], %s425
        // Predicated region
        $region45: #{tpu_custom_call.1} parent=35 // pred_check
          %p427 = pneg %p156
        $region46: #{tpu_custom_call.1} parent=35 // pred_check_branch
          %429 = sbr.rel (%p427) target = $region48
        $region47: #{tpu_custom_call.1} parent=35 // pred_region
          %s431 = ssub.s32 128, 128
          %432 = vsyncadd %s423, %s431
          %s433 = smul.addr %s28, 2
          %s434 = sadd.s32 %s29, %s433
          %s435 = smul.addr %s434, 128
          %s436 = scalar_lea.hbm %s4, %s435
          %s438 = sshll.u32 %s426, 4
          %s439 = int_to_ptr.vmem [resolvable:$true] %s438
          %441 = dma.vmem_to_hbm [thread:$0]  %s439, 128, %s436, %s423
        $region48: #{tpu_custom_call.1} parent=35 // pred_fallthru
          _
      $region36: #{tpu_custom_call.1} parent=5 // pred_fallthru
        _
      %p442 = scmp.le.s32.totalorder 2, %s19
      // Predicated region
      $region49: #{tpu_custom_call.1} parent=5 // pred_check
        %p443 = pneg %p442
      $region50: #{tpu_custom_call.1} parent=5 // pred_check_branch
        %445 = sbr.rel (%p443) target = $region52
      $region51: #{tpu_custom_call.1} parent=5 // pred_region
        %s446 = ssub.s32 %s19, 2
        // Predicated region
        $region53: #{tpu_custom_call.1} parent=51 // pred_check
          %p447 = pneg %p162
        $region54: #{tpu_custom_call.1} parent=51 // pred_check_branch
          %449 = sbr.rel (%p447) target = $region56
        $region55: #{tpu_custom_call.1} parent=51 // pred_region
          %s450 = sand.u32 %s147, 1
          %s451 = scalar_lea.sflag [#allocation4], %s450
          %s452 = sand.u32 %s147, 1
          %s453 = smul.addr %s452, 8
          %s454 = scalar_lea.vmem [#allocation7], %s453
          %455 = dma.done %s451, 128
        $region56: #{tpu_custom_call.1} parent=51 // pred_fallthru
          _
      $region52: #{tpu_custom_call.1} parent=5 // pred_fallthru
        _
    $region6: #{tpu_custom_call.1} parent=1 // loop_footer
      %s23 = sadd.s32 1, %s19
    $region7: #{tpu_custom_call.1} parent=1 // loop_footer_branch
      %18 = sbr.rel target = $region3
    $region8: #{tpu_custom_call.1} parent=1 // loop_exit
      _
    %456 = vsyncpa [#allocation3], 1
    %s457 = scalar_lea.sflag [#allocation3], 1
    %458 = vsyncpa %s457, 1
    %459 = vsyncpa [#allocation6], 1
    %s460 = scalar_lea.sflag [#allocation6], 1
    %461 = vsyncpa %s460, 1
    %462 = vsyncpa [#allocation4], 1
    %s463 = scalar_lea.sflag [#allocation4], 1
    %464 = vsyncpa %s463, 1

</llo_original>
